<compile_context>
chip_gen: v6e
topology: v6e:2x2x1
jax: 0.10.0
libtpu: 0.0.40
codegen_flags: <defaults>
</compile_context>

<pallas_src>
import math

import jax
import jax.numpy as jnp
from jax.experimental import pallas as pl
from jax.experimental.pallas import tpu as pltpu

_LANE = 128
_SUBLANE = 8
_BLOCK_BYTE_BUDGET = 4 * 1024 * 1024   # target bytes per x/out block
_MIN_BLOCK_BYTES = 512 * 1024          # never fragment blocks below this
_MIN_GRID_STEPS = 4                    # keep both v7x TensorCores busy
_VMEM_LIMIT_BYTES = 32 * 1024 * 1024   # 2 operands x 2 buffers x 4 MiB = 16 MiB + slack


def _drop_path_kernel(x_ref, scale_ref, o_ref):
    # x_ref/o_ref: (block_B, tile_rows, 128); scale_ref: (block_B, 1, 1) in x.dtype.
    # Same-dtype multiply matches torch's `x * random_tensor.div_(keep_prob)`.
    o_ref[...] = x_ref[...] * scale_ref[...]


def _choose_tiling(B, rows, itemsize):
    """Pick (block_B, tile_rows) so one block is ~_BLOCK_BYTE_BUDGET bytes."""
    bytes_per_row = _LANE * itemsize
    budget_rows = max(1, _BLOCK_BYTE_BUDGET // bytes_per_row)

    if rows >= budget_rows:
        # Large feature dim: tile the feature (row) axis, one sample per step.
        tile_rows = max(_SUBLANE, (budget_rows // _SUBLANE) * _SUBLANE)
        block_B = 1
    else:
        # Small feature dim: take the whole feature axis and block samples.
        tile_rows = rows
        block_B = min(B, max(1, budget_rows // max(rows, 1)))

    def n_steps(bB, tr):
        return (-(-B // bB)) * (-(-rows // tr))

    def blk_bytes(bB, tr):
        return bB * tr * bytes_per_row

    # Shrink blocks (halving) until there are >= _MIN_GRID_STEPS parallel grid
    # steps, but never below _MIN_BLOCK_BYTES (per-step overhead would dominate).
    while n_steps(block_B, tile_rows) < _MIN_GRID_STEPS:
        new_bB = max(1, block_B // 2)
        if new_bB < block_B and blk_bytes(new_bB, tile_rows) >= _MIN_BLOCK_BYTES:
            block_B = new_bB
            continue
        new_tr = max(_SUBLANE, ((tile_rows // 2) // _SUBLANE) * _SUBLANE)
        if new_tr < tile_rows and blk_bytes(block_B, new_tr) >= _MIN_BLOCK_BYTES:
            tile_rows = new_tr  # multiple of 8, so sublane constraint holds
            continue
        break
    return block_B, tile_rows


def drop_path_pallas(x, drop_prob=0.0, training=False, scale_by_keep=True, *, key=None):
    """Per-sample stochastic depth, matching torch `drop_path` semantics."""
    if drop_prob == 0.0 or not training:
        return x
    if key is None:
        raise ValueError(
            "drop_path_pallas requires an explicit PRNG `key` when training "
            "with drop_prob > 0; a fixed fallback key would drop the same "
            "samples every step.")

    keep_prob = 1.0 - drop_prob
    scale = (1.0 / keep_prob) if (keep_prob > 0.0 and scale_by_keep) else 1.0

    B = x.shape[0]
    N = int(math.prod(x.shape[1:])) if x.ndim > 1 else 1

    # Per-sample Bernoulli(keep_prob), hoisted out of the kernel:
    # 0.0 if dropped, `scale` if kept; cast to x.dtype (torch same-dtype math).
    keep = jax.random.bernoulli(key, p=keep_prob, shape=(B,))
    scale3 = (keep.astype(jnp.float32) * jnp.float32(scale)).astype(x.dtype)
    scale3 = scale3.reshape(B, 1, 1)

    # Lane-dense layout: pad the flattened feature axis to a multiple of 128
    # only; partial row blocks at the grid boundary are masked by Pallas, so
    # no 8*128 padding (and no extra copies for 128-aligned feature counts).
    n_pad = ((N + _LANE - 1) // _LANE) * _LANE
    rows = n_pad // _LANE
    x_flat = x.reshape(B, N)
    if n_pad != N:
        x_flat = jnp.pad(x_flat, ((0, 0), (0, n_pad - N)))
    x3 = x_flat.reshape(B, rows, _LANE)

    block_B, tile_rows = _choose_tiling(B, rows, x.dtype.itemsize)
    grid = (pl.cdiv(B, block_B), pl.cdiv(rows, tile_rows))

    out = pl.pallas_call(
        _drop_path_kernel,
        out_shape=jax.ShapeDtypeStruct((B, rows, _LANE), x.dtype),
        grid=grid,
        in_specs=[
            pl.BlockSpec((block_B, tile_rows, _LANE), lambda b, t: (b, t, 0)),
            pl.BlockSpec((block_B, 1, 1), lambda b, t: (b, 0, 0)),
        ],
        out_specs=pl.BlockSpec((block_B, tile_rows, _LANE), lambda b, t: (b, t, 0)),
        # x and out share shape/dtype and block index maps; each block is read
        # once then written, so aliasing is safe and halves peak HBM footprint
        # when x is donated at the jit boundary (XLA copies otherwise).
        input_output_aliases={0: 0},
        compiler_params=pltpu.CompilerParams(
            dimension_semantics=("parallel", "parallel"),
            vmem_limit_bytes=_VMEM_LIMIT_BYTES,
        ),
    )(x3, scale3)

    out_flat = out.reshape(B, n_pad)
    if n_pad != N:
        out_flat = out_flat[:, :N]
    return out_flat.reshape(x.shape)


class DropPath:
    """Drop paths (Stochastic Depth) per sample (main path of residual blocks)."""

    def __init__(self, drop_prob=None, scale_by_keep=True):
        self.drop_prob = drop_prob
        self.scale_by_keep = scale_by_keep
        self.training = True  # set False for eval (identity)

    def __call__(self, x, key=None):
        p = 0.0 if self.drop_prob is None else self.drop_prob
        return drop_path_pallas(x, p, self.training, self.scale_by_keep, key=key)


if __name__ == "__main__":
    key = jax.random.PRNGKey(0)
    k_data, k_drop = jax.random.split(key)

    B, C, H, W = 2, 4, 16, 16
    x = jax.random.normal(k_data, (B, C, H, W), dtype=jnp.float32)

    drop_prob = 0.25
    keep_prob = 1.0 - drop_prob

    # --- training path: per-sample stochastic depth with 1/keep_prob scaling ---
    mod = DropPath(drop_prob=drop_prob, scale_by_keep=True)
    mod.training = True
    y = jax.block_until_ready(mod(x, key=k_drop))

    assert y.shape == x.shape and y.dtype == x.dtype
    # Each sample is either fully dropped (zeros) or kept & scaled by 1/keep_prob.
    for b in range(B):
        row = y[b]
        is_dropped = bool(jnp.allclose(row, 0.0, atol=1e-6))
        is_kept = bool(jnp.allclose(row, x[b] / keep_prob, atol=1e-5, rtol=1e-5))
        assert is_dropped or is_kept, "per-sample mask semantics violated"

    # --- non-128-multiple feature size exercises the lane-padding path ---
    x2 = jax.random.normal(k_data, (2, 3, 5, 7), dtype=jnp.float32)
    y2 = jax.block_until_ready(mod(x2, key=k_drop))
    assert y2.shape == x2.shape
    for b in range(2):
        row = y2[b]
        is_dropped = bool(jnp.allclose(row, 0.0, atol=1e-6))
        is_kept = bool(jnp.allclose(row, x2[b] / keep_prob, atol=1e-5, rtol=1e-5))
        assert is_dropped or is_kept, "per-sample mask semantics violated (padded)"

    # --- bf16 path exercises itemsize-aware tiling ---
    x3_bf = jax.random.normal(k_data, (4, 8, 32, 32), dtype=jnp.bfloat16)
    y3 = jax.block_until_ready(mod(x3_bf, key=k_drop))
    assert y3.shape == x3_bf.shape and y3.dtype == x3_bf.dtype

    # --- eval path: identity ---
    mod.training = False
    y_eval = jax.block_until_ready(mod(x))
    assert bool(jnp.array_equal(y_eval, x)), "eval mode must be identity"

    print("KERNEL_OK")
</pallas_src>

<mosaic_0001>
module attributes {stable_mosaic.version = 11 : i64} {
  func.func @_drop_path_kernel(%arg0: i32, %arg1: i32, %arg2: memref<2x8x128xf32, #tpu.memory_space<vmem>>, %arg3: memref<2x1x1xf32, #tpu.memory_space<vmem>>, %arg4: memref<2x8x128xf32, #tpu.memory_space<vmem>>) attributes {dimension_semantics = [#tpu.dimension_semantics<parallel>, #tpu.dimension_semantics<parallel>], iteration_bounds = array<i64: 1, 1>, scalar_prefetch = 0 : i64, scratch_operands = 0 : i64, tpu.core_type = #tpu.core_type<tc>, window_params = [{transform_indices = @transform_0, window_bounds = array<i64: 2, 8, 128>}, {transform_indices = @transform_1, window_bounds = array<i64: 2, 1, 1>}, {transform_indices = @transform_2, window_bounds = array<i64: 2, 8, 128>}]} {
    %c0 = arith.constant 0 : index
    %c0_0 = arith.constant 0 : index
    %c0_1 = arith.constant 0 : index
    %0 = vector.load %arg2[%c0, %c0_0, %c0_1] : memref<2x8x128xf32, #tpu.memory_space<vmem>>, vector<2x8x128xf32>
    %c0_2 = arith.constant 0 : index
    %c0_3 = arith.constant 0 : index
    %c0_4 = arith.constant 0 : index
    %1 = vector.load %arg3[%c0_2, %c0_3, %c0_4] : memref<2x1x1xf32, #tpu.memory_space<vmem>>, vector<2x1x1xf32>
    %2 = vector.broadcast %1 : vector<2x1x1xf32> to vector<2x8x128xf32>
    %3 = arith.mulf %0, %2 : vector<2x8x128xf32>
    %c0_5 = arith.constant 0 : index
    %c0_6 = arith.constant 0 : index
    %c0_7 = arith.constant 0 : index
    %4 = vector.load %arg4[%c0_5, %c0_6, %c0_7] : memref<2x8x128xf32, #tpu.memory_space<vmem>>, vector<2x8x128xf32>
    tpu.vector_store %arg4[%c0_5, %c0_6, %c0_7], %3 {strides = array<i32>} : memref<2x8x128xf32, #tpu.memory_space<vmem>>, vector<2x8x128xf32>,
    return
  }
  func.func @transform_0(%arg0: i32, %arg1: i32) -> (i32, i32, i32) {
    %c0_i32 = arith.constant 0 : i32
    %c0_i32_0 = arith.constant 0 : i32
    return %arg0, %arg1, %c0_i32 : i32, i32, i32
  }
  func.func @transform_1(%arg0: i32, %arg1: i32) -> (i32, i32, i32) {
    %c0_i32 = arith.constant 0 : i32
    %c0_i32_0 = arith.constant 0 : i32
    %c0_i32_1 = arith.constant 0 : i32
    return %arg0, %c0_i32, %c0_i32_0 : i32, i32, i32
  }
  func.func @transform_2(%arg0: i32, %arg1: i32) -> (i32, i32, i32) {
    %c0_i32 = arith.constant 0 : i32
    %c0_i32_0 = arith.constant 0 : i32
    return %arg0, %arg1, %c0_i32 : i32, i32, i32
  }
}

</mosaic_0001>

<llo_original>
// kernel: tpu_custom_call.1
$region0: #{tpu_custom_call.1}
  #allocation0 [shape = 'u32[]', space=smem, size = 0x4, offset = 0x4, fixed_abs, tag = 'smem constant byte address 0x4 - core index']
  #allocation1 [shape = 'u32[144,128]{1,0:T(1,128)}', space=vmem, size = 0x12000, scoped, tag = 'internal scratch']
  %s0 = inlined_call_operand.hbm [shape: f32[2,8,128], index: 0, kind: input, shape index: {}, may-alias: {0,2}]
  %s1 = inlined_call_operand.vmem [shape: f32[2,1,1], index: 1, kind: input, shape index: {}]
  %s2 = inlined_call_operand.hbm [shape: f32[2,8,128], index: 2, kind: output, shape index: {}, may-alias: {0,2}]
  %s3 = sld [smem:[#allocation0]]
  $region22: #{tpu_custom_call.1} parent=0
    _
  %s5 = ssub.s32 1, %s3
  %s6 = scalar_select 0, %s5, %s3
  $region1: #{tpu_custom_call.1} parent=0
    #allocation2 [shape = 'u8[8192]{0}', space=vmem, size = 0x2000, scoped, tag = 'input window, operand 0, single buffered']
    #allocation3 [shape = 's32[1]{0}', space=sflag, size = 0x4, scoped, tag = 'scoped memory for tpu_custom_call.1']
    #allocation4 [shape = 's32[1]{0}', space=sflag, size = 0x4, scoped, tag = 'scoped memory for tpu_custom_call.1']
    #allocation5 [shape = 'u8[8192]{0}', space=vmem, size = 0x2000, scoped, tag = 'output window, operand 0, single buffered']
    %7 = vsyncpa [#allocation3], 0
    %8 = vsyncpa [#allocation4], 0
    // Predicated region
    $region2: #{tpu_custom_call.1} parent=1 // pred_check
      _
    $region3: #{tpu_custom_call.1} parent=1 // pred_check_branch
      %10 = sbr.rel (0) target = $region5
    $region4: #{tpu_custom_call.1} parent=1 // pred_region
      %s12 = ssub.s32 256, 256
      %13 = vsyncadd [#allocation3], %s12
      %s14 = sshll.u32 [#allocation2], 4
      %s15 = int_to_ptr.vmem [resolvable:$true] %s14
      %20 = dma.hbm_to_vmem [thread:$0]  %s0, 256, %s15, [#allocation3], 128, 128, 8
    $region5: #{tpu_custom_call.1} parent=1 // pred_fallthru
      _
    // Predicated region
    $region6: #{tpu_custom_call.1} parent=1 // pred_check
      _
    $region7: #{tpu_custom_call.1} parent=1 // pred_check_branch
      %22 = sbr.rel (0) target = $region9
    $region8: #{tpu_custom_call.1} parent=1 // pred_region
      _
    $region9: #{tpu_custom_call.1} parent=1 // pred_fallthru
      _
    // Predicated region
    $region10: #{tpu_custom_call.1} parent=1 // pred_check
      _
    $region11: #{tpu_custom_call.1} parent=1 // pred_check_branch
      %24 = sbr.rel (0) target = $region13
    $region12: #{tpu_custom_call.1} parent=1 // pred_region
      %25 = dma.done [#allocation3], 256
    $region13: #{tpu_custom_call.1} parent=1 // pred_fallthru
      _
    %v26 = vld [vmem:[#allocation2] sm:$0xff]
    %v27 = vld [vmem:[#allocation2 + $0x8] sm:$0xff]
    %v28 = vld [vmem:[%s1] sm:$0x1]
    %v29 = vld [vmem:[%s1 + $0x1] sm:$0x1]
    %v32 = vlaneseq
    %v33 = vshrl.u32 %v32, 7
    %v34 = vsub.s32 0, %v33
    %v35 = vrot.slane %v28, %v34
    %v36 = vlaneseq
    %v37 = vshrl.u32 %v36, 7
    %v38 = vsub.s32 0, %v37
    %v39 = vrot.slane %v29, %v38
    %40 = vset.pattern.permute.xlu0 0
    %41 = vperm.xlu0 %40, %v35
    %v42 = vpop.permute.xlu0 %41
    %44 = vset.pattern.permute.xlu0 0
    %45 = vperm.xlu0 %44, %v39
    %v46 = vpop.permute.xlu0 %45
    %v48 = vmul.f32 %v26, %v42
    %v49 = vmul.f32 %v27, %v46
    %50 = vst [vmem:[#allocation5] sm:$0xff] %v48
    %51 = vst [vmem:[#allocation5 + $0x8] sm:$0xff] %v49
    // Predicated region
    $region14: #{tpu_custom_call.1} parent=1 // pred_check
      _
    $region15: #{tpu_custom_call.1} parent=1 // pred_check_branch
      %53 = sbr.rel (0) target = $region17
    $region16: #{tpu_custom_call.1} parent=1 // pred_region
      %s55 = ssub.s32 256, 256
      %56 = vsyncadd [#allocation4], %s55
      %s57 = sshll.u32 [#allocation5], 4
      %s58 = int_to_ptr.vmem [resolvable:$true] %s57
      %63 = dma.vmem_to_hbm [thread:$0]  %s58, 256, %s2, [#allocation4], 128, 128, 8
    $region17: #{tpu_custom_call.1} parent=1 // pred_fallthru
      _
    // Predicated region
    $region18: #{tpu_custom_call.1} parent=1 // pred_check
      _
    $region19: #{tpu_custom_call.1} parent=1 // pred_check_branch
      %65 = sbr.rel (0) target = $region21
    $region20: #{tpu_custom_call.1} parent=1 // pred_region
      %66 = dma.done [#allocation4], 256
    $region21: #{tpu_custom_call.1} parent=1 // pred_fallthru
      _
    %67 = vsyncpa [#allocation3], 1
    %68 = vsyncpa [#allocation4], 1

</llo_original>
